<compile_context>
chip_gen: v7x
topology: tpu7x:2x2x1
jax: 0.10.0
libtpu: 0.0.40
codegen_flags: <defaults>
</compile_context>

<pallas_src>
import functools

import jax
import jax.numpy as jnp
from jax.experimental import pallas as pl
from jax.experimental.pallas import tpu as pltpu

STATE_DIM = 1      # module: state_dim = 1
HIDDEN = 64
ACTION_DIM = 3     # ShowerEnv action space (Discrete(3))

PAD = 128                      # lane-dense width for hidden + output
VEC_ROWS = 8                   # sublane-aligned block holding the 4 vector params
W2_OFF = VEC_ROWS              # rows [  8, 136): w2 zero-padded to (128, 128)
W3_OFF = VEC_ROWS + PAD        # rows [136, 264): w3 zero-padded to (128, 128)
P_ROWS = VEC_ROWS + 2 * PAD    # 264 rows -> one (264, 128) f32 slab (~132 KiB)

NEG_BIG = -1e30                # pre-baked argmax mask for padded Q lanes


def dqn_kernel(x_ref, p_ref, q_ref):
    x = x_ref[...]                                # (TB, 1) f32

    # Static slices out of the single packed weight slab (no extra DMAs).
    w1 = p_ref[0:1, :]                            # (1, 128) Linear(1,64) weights, zero-padded
    b1 = p_ref[1:2, :]                            # (1, 128)
    b2 = p_ref[2:3, :]                            # (1, 128)
    b3 = p_ref[3:4, :]                            # (1, 128); lanes >= ACTION_DIM hold -1e30
    w2 = p_ref[W2_OFF:W2_OFF + PAD, :]            # (128, 128)
    w3 = p_ref[W3_OFF:W3_OFF + PAD, :]            # (128, 128)

    # Layer 1: K=1 contraction == outer product -> VPU broadcast-mul, skip the MXU.
    h1 = jnp.maximum(x * w1 + b1, 0.0)            # (TB, 128); padded lanes stay 0
    # Layers 2 / 3 on the MXU with f32 accumulation.
    h2 = jnp.maximum(
        jnp.dot(h1, w2, preferred_element_type=jnp.float32) + b2, 0.0)
    q = jnp.dot(h2, w3, preferred_element_type=jnp.float32) + b3   # (TB, 128)
    # Lanes >= ACTION_DIM of q now hold -1e30 (baked into b3), so no explicit
    # lane mask is needed for the argmax below.

    # Fused greedy-action argmax (ties -> lowest lane index, matching
    # torch.argmax / jnp.argmax first-occurrence semantics).
    lane = jax.lax.broadcasted_iota(jnp.int32, q.shape, 1)
    m = jnp.max(q, axis=1, keepdims=True)
    idx = jnp.where(q == m, lane, PAD)
    action = jnp.min(idx, axis=1, keepdims=True).astype(jnp.float32)  # small int, exact in f32

    # Fold the action into the (otherwise padded) lane ACTION_DIM so there is a
    # single lane-dense, unmasked 128-wide output store and one writeback DMA.
    q_ref[...] = jnp.where(lane == ACTION_DIM, action, q)


def pack_params(w1, b1, w2, b2, w3, b3):
    """Pack all six tensors into a single lane-padded (264, 128) f32 slab."""
    p = jnp.zeros((P_ROWS, PAD), jnp.float32)
    p = p.at[0, :HIDDEN].set(w1.reshape(HIDDEN))         # row of Linear(1,64) weights
    p = p.at[1, :HIDDEN].set(b1.reshape(HIDDEN))
    p = p.at[2, :HIDDEN].set(b2.reshape(HIDDEN))
    # Row 3: real output biases in lanes [0, ACTION_DIM); padded lanes pre-baked
    # to a large negative value so the in-kernel argmax needs no lane mask.
    p = p.at[3, :].set(NEG_BIG)
    p = p.at[3, :ACTION_DIM].set(b3.reshape(ACTION_DIM))
    p = p.at[W2_OFF:W2_OFF + HIDDEN, :HIDDEN].set(w2)
    p = p.at[W3_OFF:W3_OFF + HIDDEN, :ACTION_DIM].set(w3)
    return p


@functools.partial(jax.jit, static_argnames=("tile_b",))
def _dqn_call(x_pad, packed, tile_b):
    bp = x_pad.shape[0]
    grid = (bp // tile_b,)
    return pl.pallas_call(
        dqn_kernel,
        out_shape=jax.ShapeDtypeStruct((bp, PAD), jnp.float32),
        grid_spec=pltpu.PrefetchScalarGridSpec(
            num_scalar_prefetch=0,
            grid=grid,
            in_specs=[
                pl.BlockSpec((tile_b, STATE_DIM), lambda i: (i, 0)),   # activation stream
                pl.BlockSpec((P_ROWS, PAD), lambda i: (0, 0)),         # weights stay resident
            ],
            out_specs=pl.BlockSpec((tile_b, PAD), lambda i: (i, 0)),   # lane-dense Q+action slab
        ),
        compiler_params=pltpu.CompilerParams(
            dimension_semantics=("parallel",)),   # 2-TC sharding on v7x; no-op on v5e/v6e
    )(x_pad, packed)


def dqn_forward(x, packed_params, max_tile_b=2048):
    """x: (B, STATE_DIM) f32 -> (Q-values (B, 3) f32, greedy actions (B,) int32)."""
    b = x.shape[0]
    # For b >= 16 target 2+ grid steps so the "parallel" batch axis can split
    # across both TensorCores on v7x; cap tile_b to keep per-step VMEM small
    # and amortize the fixed per-step grid overhead on big batches.
    target = -(-b // 2) if b >= 16 else b
    tile_b = min(max_tile_b, max(8, ((target + 7) // 8) * 8))   # sublane-aligned batch tile
    bp = ((b + tile_b - 1) // tile_b) * tile_b
    if bp != b:
        x = jnp.pad(x, ((0, bp - b), (0, 0)))
    q_pad = _dqn_call(x, packed_params, tile_b)
    q = q_pad[:b, :ACTION_DIM]
    actions = q_pad[:b, ACTION_DIM].astype(jnp.int32)
    return q, actions


def init_params(key):
    """Deterministic synthetic init (shapes match the module's nn.Linear layers)."""
    k1, k2, k3 = jax.random.split(key, 3)
    # Stored as (in_features, out_features): y = x @ W + b (== PyTorch x @ W.T).
    w1 = jax.random.normal(k1, (STATE_DIM, HIDDEN), jnp.float32) / jnp.sqrt(STATE_DIM)
    b1 = jnp.zeros((HIDDEN,), jnp.float32)
    w2 = jax.random.normal(k2, (HIDDEN, HIDDEN), jnp.float32) / jnp.sqrt(HIDDEN)
    b2 = jnp.zeros((HIDDEN,), jnp.float32)
    w3 = jax.random.normal(k3, (HIDDEN, ACTION_DIM), jnp.float32) / jnp.sqrt(HIDDEN)
    b3 = jnp.zeros((ACTION_DIM,), jnp.float32)
    return (w1, b1, w2, b2, w3, b3)


def reference_forward(x, params):
    w1, b1, w2, b2, w3, b3 = params
    h1 = jnp.maximum(x @ w1 + b1, 0.0)
    h2 = jnp.maximum(h1 @ w2 + b2, 0.0)
    return h2 @ w3 + b3


if __name__ == "__main__":
    key = jax.random.PRNGKey(0)
    k_params, k_x = jax.random.split(key)

    params = init_params(k_params)
    packed = pack_params(*params)

    batch = 8
    # ShowerEnv state is a single scalar temperature-like value.
    x = jax.random.uniform(k_x, (batch, STATE_DIM), jnp.float32, minval=0.0, maxval=60.0)

    q, actions = dqn_forward(x, packed)
    q, actions = jax.block_until_ready((q, actions))

    q_ref = reference_forward(x, params)
    a_ref = jnp.argmax(q_ref, axis=1).astype(jnp.int32)

    assert q.shape == (batch, ACTION_DIM)
    assert actions.shape == (batch,)
    assert jnp.allclose(q, q_ref, atol=1e-4, rtol=1e-4)
    assert jnp.array_equal(actions, a_ref)

    # Also exercise a multi-step grid (batch >= 16 -> 2 grid steps).
    x2 = jax.random.uniform(jax.random.PRNGKey(1), (37, STATE_DIM), jnp.float32,
                            minval=0.0, maxval=60.0)
    q2, a2 = jax.block_until_ready(dqn_forward(x2, packed))
    q2_ref = reference_forward(x2, params)
    assert jnp.allclose(q2, q2_ref, atol=1e-4, rtol=1e-4)
    assert jnp.array_equal(a2, jnp.argmax(q2_ref, axis=1).astype(jnp.int32))

    print("KERNEL_OK")
</pallas_src>

<mosaic_0001>
module attributes {stable_mosaic.version = 11 : i64} {
  func.func @dqn_kernel(%arg0: i32, %arg1: memref<8x1xf32, #tpu.memory_space<vmem>>, %arg2: memref<264x128xf32, #tpu.memory_space<vmem>>, %arg3: memref<8x128xf32, #tpu.memory_space<vmem>>) attributes {dimension_semantics = [#tpu.dimension_semantics<parallel>], iteration_bounds = array<i64: 1>, scalar_prefetch = 0 : i64, scratch_operands = 0 : i64, tpu.core_type = #tpu.core_type<tc>, window_params = [{transform_indices = @transform_0, window_bounds = array<i64: 8, 1>}, {pipeline_mode = #tpu.pipeline_mode<synchronous>, transform_indices = @transform_1, window_bounds = array<i64: 264, 128>}, {transform_indices = @transform_2, window_bounds = array<i64: 8, 128>}]} {
    %c0 = arith.constant 0 : index
    %c0_0 = arith.constant 0 : index
    %0 = vector.load %arg1[%c0, %c0_0] : memref<8x1xf32, #tpu.memory_space<vmem>>, vector<8x1xf32>
    %c0_1 = arith.constant 0 : index
    %c0_2 = arith.constant 0 : index
    %1 = vector.load %arg2[%c0_1, %c0_2] : memref<264x128xf32, #tpu.memory_space<vmem>>, vector<1x128xf32>
    %c1 = arith.constant 1 : index
    %c0_3 = arith.constant 0 : index
    %2 = vector.load %arg2[%c1, %c0_3] : memref<264x128xf32, #tpu.memory_space<vmem>>, vector<1x128xf32>
    %c2 = arith.constant 2 : index
    %c0_4 = arith.constant 0 : index
    %3 = vector.load %arg2[%c2, %c0_4] : memref<264x128xf32, #tpu.memory_space<vmem>>, vector<1x128xf32>
    %c3 = arith.constant 3 : index
    %c0_5 = arith.constant 0 : index
    %4 = vector.load %arg2[%c3, %c0_5] : memref<264x128xf32, #tpu.memory_space<vmem>>, vector<1x128xf32>
    %c8 = arith.constant 8 : index
    %c0_6 = arith.constant 0 : index
    %5 = vector.load %arg2[%c8, %c0_6] : memref<264x128xf32, #tpu.memory_space<vmem>>, vector<128x128xf32>
    %c136 = arith.constant 136 : index
    %c0_7 = arith.constant 0 : index
    %6 = vector.load %arg2[%c136, %c0_7] : memref<264x128xf32, #tpu.memory_space<vmem>>, vector<128x128xf32>
    %7 = vector.broadcast %0 : vector<8x1xf32> to vector<8x128xf32>
    %8 = vector.broadcast %1 : vector<1x128xf32> to vector<8x128xf32>
    %9 = arith.mulf %7, %8 : vector<8x128xf32>
    %10 = vector.broadcast %2 : vector<1x128xf32> to vector<8x128xf32>
    %11 = arith.addf %9, %10 : vector<8x128xf32>
    %cst = arith.constant 0.000000e+00 : f32
    %12 = vector.broadcast %cst : f32 to vector<8x128xf32>
    %13 = arith.maximumf %11, %12 : vector<8x128xf32>
    %cst_8 = arith.constant dense<0.000000e+00> : vector<8x128xf32>
    %14 = tpu.matmul %13, %5, %cst_8 {dimension_numbers = #tpu.dot_dimension_numbers<[1], [0], [0], [1], [0, 0, 1, 1], [], []>} : vector<8x128xf32>, vector<128x128xf32>, vector<8x128xf32> -> vector<8x128xf32>
    %15 = vector.broadcast %3 : vector<1x128xf32> to vector<8x128xf32>
    %16 = arith.addf %14, %15 : vector<8x128xf32>
    %cst_9 = arith.constant 0.000000e+00 : f32
    %17 = vector.broadcast %cst_9 : f32 to vector<8x128xf32>
    %18 = arith.maximumf %16, %17 : vector<8x128xf32>
    %cst_10 = arith.constant dense<0.000000e+00> : vector<8x128xf32>
    %19 = tpu.matmul %18, %6, %cst_10 {dimension_numbers = #tpu.dot_dimension_numbers<[1], [0], [0], [1], [0, 0, 1, 1], [], []>} : vector<8x128xf32>, vector<128x128xf32>, vector<8x128xf32> -> vector<8x128xf32>
    %20 = vector.broadcast %4 : vector<1x128xf32> to vector<8x128xf32>
    %21 = arith.addf %19, %20 : vector<8x128xf32>
    %22 = tpu.iota {dimensions = array<i32: 1>} : vector<8x128xi32>
    %cst_11 = arith.constant dense<0xFF800000> : vector<8xf32>
    %23 = vector.multi_reduction <maximumf>, %21, %cst_11 [1] : vector<8x128xf32> to vector<8xf32>
    %24 = vector.shape_cast %23 : vector<8xf32> to vector<8x1xf32>
    %25 = vector.broadcast %24 : vector<8x1xf32> to vector<8x128xf32>
    %26 = arith.cmpf oeq, %21, %25 : vector<8x128xf32>
    %c128_i32 = arith.constant 128 : i32
    %27 = vector.broadcast %c128_i32 : i32 to vector<8x128xi32>
    %28 = arith.select %26, %22, %27 : vector<8x128xi1>, vector<8x128xi32>
    %cst_12 = arith.constant dense<2147483647> : vector<8xi32>
    %29 = vector.multi_reduction <minsi>, %28, %cst_12 [1] : vector<8x128xi32> to vector<8xi32>
    %30 = vector.shape_cast %29 : vector<8xi32> to vector<8x1xi32>
    %31 = arith.sitofp %30 : vector<8x1xi32> to vector<8x1xf32>
    %c3_i32 = arith.constant 3 : i32
    %32 = vector.broadcast %c3_i32 : i32 to vector<8x128xi32>
    %33 = arith.cmpi eq, %22, %32 : vector<8x128xi32>
    %34 = vector.shape_cast %31 : vector<8x1xf32> to vector<8x1xf32>
    %35 = vector.broadcast %34 : vector<8x1xf32> to vector<8x128xf32>
    %36 = arith.select %33, %35, %21 : vector<8x128xi1>, vector<8x128xf32>
    %c0_13 = arith.constant 0 : index
    %c0_14 = arith.constant 0 : index
    %37 = vector.load %arg3[%c0_13, %c0_14] : memref<8x128xf32, #tpu.memory_space<vmem>>, vector<8x128xf32>
    tpu.vector_store %arg3[%c0_13, %c0_14], %36 {strides = array<i32>} : memref<8x128xf32, #tpu.memory_space<vmem>>, vector<8x128xf32>,
    return
  }
  func.func @transform_0(%arg0: i32) -> (i32, i32) {
    %c0_i32 = arith.constant 0 : i32
    %c0_i32_0 = arith.constant 0 : i32
    return %arg0, %c0_i32 : i32, i32
  }
  func.func @transform_1(%arg0: i32) -> (i32, i32) {
    %c0_i32 = arith.constant 0 : i32
    %c0_i32_0 = arith.constant 0 : i32
    %c0_i32_1 = arith.constant 0 : i32
    return %c0_i32, %c0_i32_0 : i32, i32
  }
  func.func @transform_2(%arg0: i32) -> (i32, i32) {
    %c0_i32 = arith.constant 0 : i32
    %c0_i32_0 = arith.constant 0 : i32
    return %arg0, %c0_i32 : i32, i32
  }
}

</mosaic_0001>

<llo_original>
// kernel: _dqn_call.1
$region0: #{_dqn_call.1}
  #allocation0 [shape = 'u32[]', space=smem, size = 0x4, offset = 0x4, fixed_abs, tag = 'smem constant byte address 0x4 - core index']
  #allocation1 [shape = 'u32[144,128]{1,0:T(1,128)}', space=vmem, size = 0x12000, scoped, tag = 'internal scratch']
  %s0 = inlined_call_operand.vmem [shape: f32[8,1], index: 0, kind: input, shape index: {}]
  %s1 = inlined_call_operand.hbm [shape: f32[264,128], index: 1, kind: input, shape index: {}]
  %s2 = inlined_call_operand.hbm [shape: f32[8,128], index: 2, kind: output, shape index: {}]
  %s3 = sld [smem:[#allocation0]]
  $region22: #{_dqn_call.1} parent=0
    _
  %s5 = ssub.s32 1, %s3
  %s6 = scalar_select 0, %s5, %s3
  $region1: #{_dqn_call.1} parent=0
    #allocation2 [shape = 'u8[135168]{0}', space=vmem, size = 0x21000, scoped, tag = 'input window, operand 1, single buffered']
    #allocation3 [shape = 's32[1]{0}', space=sflag, size = 0x4, scoped, tag = 'scoped memory for _dqn_call.1']
    #allocation4 [shape = 's32[1]{0}', space=sflag, size = 0x4, scoped, tag = 'scoped memory for _dqn_call.1']
    #allocation5 [shape = 'u8[4096]{0}', space=vmem, size = 0x1000, scoped, tag = 'output window, operand 0, single buffered']
    %7 = vsyncpa [#allocation3], 0
    %8 = vsyncpa [#allocation4], 0
    // Predicated region
    $region2: #{_dqn_call.1} parent=1 // pred_check
      _
    $region3: #{_dqn_call.1} parent=1 // pred_check_branch
      %10 = sbr.rel (0) target = $region5
    $region4: #{_dqn_call.1} parent=1 // pred_region
      _
    $region5: #{_dqn_call.1} parent=1 // pred_fallthru
      _
    // Predicated region
    $region6: #{_dqn_call.1} parent=1 // pred_check
      _
    $region7: #{_dqn_call.1} parent=1 // pred_check_branch
      %12 = sbr.rel (0) target = $region9
    $region8: #{_dqn_call.1} parent=1 // pred_region
      %s14 = ssub.s32 4224, 4224
      %15 = vsyncadd [#allocation3], %s14
      %s16 = sshll.u32 [#allocation2], 4
      %s17 = int_to_ptr.vmem [resolvable:$true] %s16
      %22 = dma.hbm_to_vmem [thread:$0]  %s1, 4224, %s17, [#allocation3], 128, 128, 8
    $region9: #{_dqn_call.1} parent=1 // pred_fallthru
      _
    // Predicated region
    $region10: #{_dqn_call.1} parent=1 // pred_check
      _
    $region11: #{_dqn_call.1} parent=1 // pred_check_branch
      %24 = sbr.rel (0) target = $region13
    $region12: #{_dqn_call.1} parent=1 // pred_region
      %25 = dma.done [#allocation3], 4224
    $region13: #{_dqn_call.1} parent=1 // pred_fallthru
      _
    %v26 = vld [vmem:[%s0] sm:$0xff]
    %v27 = vld [vmem:[#allocation2] sm:$0x1]
    %v28 = vld [vmem:[#allocation2 + $0x1] sm:$0x1]
    %v29 = vld [vmem:[#allocation2 + $0x2] sm:$0x1]
    %v30 = vld [vmem:[#allocation2 + $0x3] sm:$0x1]
    %v31 = vld [vmem:[#allocation2 + $0x8] sm:$0xff]
    %v32 = vld [vmem:[#allocation2 + $0x10] sm:$0xff]
    %v33 = vld [vmem:[#allocation2 + $0x18] sm:$0xff]
    %v34 = vld [vmem:[#allocation2 + $0x20] sm:$0xff]
    %v35 = vld [vmem:[#allocation2 + $0x28] sm:$0xff]
    %v36 = vld [vmem:[#allocation2 + $0x30] sm:$0xff]
    %v37 = vld [vmem:[#allocation2 + $0x38] sm:$0xff]
    %v38 = vld [vmem:[#allocation2 + $0x40] sm:$0xff]
    %v39 = vld [vmem:[#allocation2 + $0x48] sm:$0xff]
    %v40 = vld [vmem:[#allocation2 + $0x50] sm:$0xff]
    %v41 = vld [vmem:[#allocation2 + $0x58] sm:$0xff]
    %v42 = vld [vmem:[#allocation2 + $0x60] sm:$0xff]
    %v43 = vld [vmem:[#allocation2 + $0x68] sm:$0xff]
    %v44 = vld [vmem:[#allocation2 + $0x70] sm:$0xff]
    %v45 = vld [vmem:[#allocation2 + $0x78] sm:$0xff]
    %v46 = vld [vmem:[#allocation2 + $0x80] sm:$0xff]
    %v47 = vld [vmem:[#allocation2 + $0x88] sm:$0xff]
    %v48 = vld [vmem:[#allocation2 + $0x90] sm:$0xff]
    %v49 = vld [vmem:[#allocation2 + $0x98] sm:$0xff]
    %v50 = vld [vmem:[#allocation2 + $0xa0] sm:$0xff]
    %v51 = vld [vmem:[#allocation2 + $0xa8] sm:$0xff]
    %v52 = vld [vmem:[#allocation2 + $0xb0] sm:$0xff]
    %v53 = vld [vmem:[#allocation2 + $0xb8] sm:$0xff]
    %v54 = vld [vmem:[#allocation2 + $0xc0] sm:$0xff]
    %v55 = vld [vmem:[#allocation2 + $0xc8] sm:$0xff]
    %v56 = vld [vmem:[#allocation2 + $0xd0] sm:$0xff]
    %v57 = vld [vmem:[#allocation2 + $0xd8] sm:$0xff]
    %v58 = vld [vmem:[#allocation2 + $0xe0] sm:$0xff]
    %v59 = vld [vmem:[#allocation2 + $0xe8] sm:$0xff]
    %v60 = vld [vmem:[#allocation2 + $0xf0] sm:$0xff]
    %v61 = vld [vmem:[#allocation2 + $0xf8] sm:$0xff]
    %v62 = vld [vmem:[#allocation2 + $0x100] sm:$0xff]
    %64 = vset.pattern.permute.xlu0 0
    %65 = vperm.xlu0 %64, %v26
    %v66 = vpop.permute.xlu0 %65
    %v68 = vlaneseq
    %v69 = vshrl.u32 %v68, 7
    %v70 = vsub.s32 0, %v69
    %v71 = vrot.slane %v27, %v70
    %v72 = vmul.f32 %v66, %v71
    %v73 = vlaneseq
    %v74 = vshrl.u32 %v73, 7
    %v75 = vsub.s32 0, %v74
    %v76 = vrot.slane %v28, %v75
    %v77 = vadd.f32 %v72, %v76
    %v78 = vmax.f32 %v77, 0.0
    %v79 = vlaneseq
    %v80 = vshrl.u32 %v79, 7
    %v81 = vsub.s32 0, %v80
    %v82 = vrot.slane %v29, %v81
    %83 = vmatprep.subr.mxu0 0.0
    %84 = vmatpush1.msra.mxu0 %v31
    %85 = vmatprep.subr.mxu0 0.0
    %86 = vmatpush1.msra.mxu0 %v32
    %87 = vmatprep.subr.mxu0 0.0
    %88 = vmatpush1.msra.mxu0 %v33
    %89 = vmatprep.subr.mxu0 0.0
    %90 = vmatpush1.msra.mxu0 %v34
    %91 = vmatprep.subr.mxu0 0.0
    %92 = vmatpush1.msra.mxu0 %v35
    %93 = vmatprep.subr.mxu0 0.0
    %94 = vmatpush1.msra.mxu0 %v36
    %95 = vmatprep.subr.mxu0 0.0
    %96 = vmatpush1.msra.mxu0 %v37
    %97 = vmatprep.subr.mxu0 0.0
    %98 = vmatpush1.msra.mxu0 %v38
    %99 = vmatprep.subr.mxu0 0.0
    %100 = vmatpush1.msra.mxu0 %v39
    %101 = vmatprep.subr.mxu0 0.0
    %102 = vmatpush1.msra.mxu0 %v40
    %103 = vmatprep.subr.mxu0 0.0
    %104 = vmatpush1.msra.mxu0 %v41
    %105 = vmatprep.subr.mxu0 0.0
    %106 = vmatpush1.msra.mxu0 %v42
    %107 = vmatprep.subr.mxu0 0.0
    %108 = vmatpush1.msra.mxu0 %v43
    %109 = vmatprep.subr.mxu0 0.0
    %110 = vmatpush1.msra.mxu0 %v44
    %111 = vmatprep.subr.mxu0 0.0
    %112 = vmatpush1.msra.mxu0 %v45
    %113 = vmatprep.subr.mxu0 0.0
    %114 = vmatpush1.msra.mxu0 %v46
    %115 = vmatprep.subr.mxu0 0.0
    %116 = vmatpush1.msra.mxu0 0.0
    %117 = vmatprep.subr.mxu0 0.0
    %118 = vmatpush1.msra.mxu0 0.0
    %119 = vmatprep.subr.mxu0 0.0
    %120 = vmatpush1.msra.mxu0 0.0
    %121 = vmatprep.subr.mxu0 0.0
    %122 = vmatpush1.msra.mxu0 0.0
    %123 = vmatprep.subr.mxu0 0.0
    %124 = vmatpush1.msra.mxu0 0.0
    %125 = vmatprep.subr.mxu0 0.0
    %126 = vmatpush1.msra.mxu0 0.0
    %127 = vmatprep.subr.mxu0 0.0
    %128 = vmatpush1.msra.mxu0 0.0
    %129 = vmatprep.subr.mxu0 0.0
    %130 = vmatpush1.msra.mxu0 0.0
    %131 = vmatprep.subr.mxu0 0.0
    %132 = vmatpush1.msra.mxu0 0.0
    %133 = vmatprep.subr.mxu0 0.0
    %134 = vmatpush1.msra.mxu0 0.0
    %135 = vmatprep.subr.mxu0 0.0
    %136 = vmatpush1.msra.mxu0 0.0
    %137 = vmatprep.subr.mxu0 0.0
    %138 = vmatpush1.msra.mxu0 0.0
    %139 = vmatprep.subr.mxu0 0.0
    %140 = vmatpush1.msra.mxu0 0.0
    %141 = vmatprep.subr.mxu0 0.0
    %142 = vmatpush1.msra.mxu0 0.0
    %143 = vmatprep.subr.mxu0 0.0
    %144 = vmatpush1.msra.mxu0 0.0
    %145 = vmatprep.subr.mxu0 0.0
    %146 = vmatpush1.msra.mxu0 0.0
    %147 = vmatprep.mubr.f32.mxu0 0.0
    %148 = vmatmul.mubr.f32.gmra.mrb[0].mxu0 %v78
    %v149 = vpop.f32.mrb[0].mxu0
    %v150 = vadd.f32 %v82, %v149
    %v151 = vpop.f32.mrb[0].mxu0
    %152 = vdwg.mxu0
    %v153 = vmax.f32 %v150, 0.0
    %v154 = vlaneseq
    %v155 = vshrl.u32 %v154, 7
    %v156 = vsub.s32 0, %v155
    %v157 = vrot.slane %v30, %v156
    %158 = vmatprep.subr.mxu0 0.0
    %159 = vmatpush1.msra.mxu0 %v47
    %160 = vmatprep.subr.mxu0 0.0
    %161 = vmatpush1.msra.mxu0 %v48
    %162 = vmatprep.subr.mxu0 0.0
    %163 = vmatpush1.msra.mxu0 %v49
    %164 = vmatprep.subr.mxu0 0.0
    %165 = vmatpush1.msra.mxu0 %v50
    %166 = vmatprep.subr.mxu0 0.0
    %167 = vmatpush1.msra.mxu0 %v51
    %168 = vmatprep.subr.mxu0 0.0
    %169 = vmatpush1.msra.mxu0 %v52
    %170 = vmatprep.subr.mxu0 0.0
    %171 = vmatpush1.msra.mxu0 %v53
    %172 = vmatprep.subr.mxu0 0.0
    %173 = vmatpush1.msra.mxu0 %v54
    %174 = vmatprep.subr.mxu0 0.0
    %175 = vmatpush1.msra.mxu0 %v55
    %176 = vmatprep.subr.mxu0 0.0
    %177 = vmatpush1.msra.mxu0 %v56
    %178 = vmatprep.subr.mxu0 0.0
    %179 = vmatpush1.msra.mxu0 %v57
    %180 = vmatprep.subr.mxu0 0.0
    %181 = vmatpush1.msra.mxu0 %v58
    %182 = vmatprep.subr.mxu0 0.0
    %183 = vmatpush1.msra.mxu0 %v59
    %184 = vmatprep.subr.mxu0 0.0
    %185 = vmatpush1.msra.mxu0 %v60
    %186 = vmatprep.subr.mxu0 0.0
    %187 = vmatpush1.msra.mxu0 %v61
    %188 = vmatprep.subr.mxu0 0.0
    %189 = vmatpush1.msra.mxu0 %v62
    %190 = vmatprep.subr.mxu0 0.0
    %191 = vmatpush1.msra.mxu0 0.0
    %192 = vmatprep.subr.mxu0 0.0
    %193 = vmatpush1.msra.mxu0 0.0
    %194 = vmatprep.subr.mxu0 0.0
    %195 = vmatpush1.msra.mxu0 0.0
    %196 = vmatprep.subr.mxu0 0.0
    %197 = vmatpush1.msra.mxu0 0.0
    %198 = vmatprep.subr.mxu0 0.0
    %199 = vmatpush1.msra.mxu0 0.0
    %200 = vmatprep.subr.mxu0 0.0
    %201 = vmatpush1.msra.mxu0 0.0
    %202 = vmatprep.subr.mxu0 0.0
    %203 = vmatpush1.msra.mxu0 0.0
    %204 = vmatprep.subr.mxu0 0.0
    %205 = vmatpush1.msra.mxu0 0.0
    %206 = vmatprep.subr.mxu0 0.0
    %207 = vmatpush1.msra.mxu0 0.0
    %208 = vmatprep.subr.mxu0 0.0
    %209 = vmatpush1.msra.mxu0 0.0
    %210 = vmatprep.subr.mxu0 0.0
    %211 = vmatpush1.msra.mxu0 0.0
    %212 = vmatprep.subr.mxu0 0.0
    %213 = vmatpush1.msra.mxu0 0.0
    %214 = vmatprep.subr.mxu0 0.0
    %215 = vmatpush1.msra.mxu0 0.0
    %216 = vmatprep.subr.mxu0 0.0
    %217 = vmatpush1.msra.mxu0 0.0
    %218 = vmatprep.subr.mxu0 0.0
    %219 = vmatpush1.msra.mxu0 0.0
    %220 = vmatprep.subr.mxu0 0.0
    %221 = vmatpush1.msra.mxu0 0.0
    %222 = vmatprep.mubr.f32.mxu0 0.0
    %223 = vmatmul.mubr.f32.gmra.mrb[0].mxu0 %v153
    %v224 = vpop.f32.mrb[0].mxu0
    %v225 = vadd.f32 %v157, %v224
    %v226 = vpop.f32.mrb[0].mxu0
    %227 = vdwg.mxu0
    %v228 = vlaneseq
    %v229 = vand.u32 %v228, 127
    %230 = vmax.xlane.f32.xlu0 %v225
    %v231 = vpop.xlane.xlu0 %230
    %vm232 = vcmp.eq.f32.partialorder %v225, %v231
    %v233 = vsel %vm232, %v229, 128
    %v234 = vand.u32 %v233, 65535
    %v235 = vshra.s32 %v233, 16
    %v236 = vcvt.s32.f32 %v234
    %v237 = vcvt.s32.f32 %v235
    %238 = vmin.xlane.f32.xlu0 %v237
    %v239 = vpop.xlane.xlu0 %238
    %vm240 = vcmp.eq.f32.partialorder %v237, %v239
    %v241 = vsel %vm240, %v236, inf
    %242 = vmin.xlane.f32.xlu0 %v241
    %v243 = vpop.xlane.xlu0 %242
    %v244 = vcvt.f32.s32 %v243
    %v245 = vcvt.f32.s32 %v239
    %v246 = vshll.u32 %v245, 16
    %v247 = vadd.s32 %v246, %v244
    %v248 = vcvt.s32.f32 %v247
    %vm249 = vcmp.eq.s32.totalorder %v229, 3
    %v250 = vsel %vm249, %v248, %v225
    %251 = vst [vmem:[#allocation5] sm:$0xff] %v250
    // Predicated region
    $region14: #{_dqn_call.1} parent=1 // pred_check
      _
    $region15: #{_dqn_call.1} parent=1 // pred_check_branch
      %253 = sbr.rel (0) target = $region17
    $region16: #{_dqn_call.1} parent=1 // pred_region
      %s255 = ssub.s32 128, 128
      %256 = vsyncadd [#allocation4], %s255
      %s258 = sshll.u32 [#allocation5], 4
      %s259 = int_to_ptr.vmem [resolvable:$true] %s258
      %261 = dma.vmem_to_hbm [thread:$0]  %s259, 128, %s2, [#allocation4]
    $region17: #{_dqn_call.1} parent=1 // pred_fallthru
      _
    // Predicated region
    $region18: #{_dqn_call.1} parent=1 // pred_check
      _
    $region19: #{_dqn_call.1} parent=1 // pred_check_branch
      %263 = sbr.rel (0) target = $region21
    $region20: #{_dqn_call.1} parent=1 // pred_region
      %264 = dma.done [#allocation4], 128
    $region21: #{_dqn_call.1} parent=1 // pred_fallthru
      _
    %265 = vsyncpa [#allocation3], 1
    %266 = vsyncpa [#allocation4], 1

</llo_original>
